<compile_context>
chip_gen: v7x
topology: tpu7x:2x2x1
jax: 0.10.0
libtpu: 0.0.40
codegen_flags: <defaults>
</compile_context>

<pallas_src>
import functools
import math

import jax
import jax.numpy as jnp
from jax import lax
from jax.experimental import pallas as pl
from jax.experimental.pallas import tpu as pltpu

NUM_GROUPS = 32          # normalization(channels) == GroupNorm32(32, channels)
GN_EPS = 1e-5


# ---------------------------------------------------------------------------
# pltpu.roll semantics probe (one-time): does it match np.roll,
# i.e. out[j] = in[(j - shift) % n]?  Resolved once on the real backend before
# any production kernel is traced, so taps cannot silently flip.
# ---------------------------------------------------------------------------
_ROLL_IS_NUMPY_STYLE = None


def _roll_semantics_is_numpy():
    global _ROLL_IS_NUMPY_STYLE
    if _ROLL_IS_NUMPY_STYLE is None:
        def k(x_ref, o_ref):
            o_ref[...] = pltpu.roll(x_ref[...], shift=1, axis=1)

        x = jnp.tile(jnp.arange(128, dtype=jnp.float32)[None, :], (8, 1))
        y = pl.pallas_call(
            k, out_shape=jax.ShapeDtypeStruct((8, 128), jnp.float32))(x)
        _ROLL_IS_NUMPY_STYLE = bool(float(y[0, 0]) == 127.0)
    return _ROLL_IS_NUMPY_STYLE


# ---------------------------------------------------------------------------
# In-kernel building block: GroupNorm32 + SiLU + stacked 9-tap im2col (bf16)
# ---------------------------------------------------------------------------
def _build_gn_silu_tap_stack(src_ref, g_ref, b_ref, avg_ref, mask_ref,
                             stack_ref, *, eps, width, c, np_roll):
    """One sample: GN32 -> SiLU on src [c, HW], then write the 9 rolled +
    zero-padding-masked taps stacked along the contraction axis into
    stack_ref [9*c, HW] (bf16) so each out-channel tile needs only ONE wide-K
    MXU matmul. Runs once per sample (guarded by pl.when at the call site)."""
    x = src_ref[...].astype(jnp.float32)
    hw = x.shape[-1]

    # reduce-then-average: XLU row reduce + tiny [c,c]x[c,1] matvec.
    s1 = jnp.sum(x, axis=-1, keepdims=True)                        # [c, 1]
    mean = jnp.dot(avg_ref[...], s1, preferred_element_type=jnp.float32)
    xc = x - mean
    s2 = jnp.sum(xc * xc, axis=-1, keepdims=True)                  # [c, 1]
    var = jnp.dot(avg_ref[...], s2, preferred_element_type=jnp.float32)
    y = xc * lax.rsqrt(var + eps) * g_ref[...] + b_ref[...]
    y = y * jax.nn.sigmoid(y)                                      # fused SiLU

    yb = y.astype(jnp.bfloat16)            # cast once; roll + mask in bf16
    for t in range(9):
        di, dj = divmod(t, 3)
        shift = (di - 1) * width + (dj - 1)
        if shift == 0:
            yt = yb
        else:
            amt = (-shift) % hw if np_roll else shift % hw
            yt = pltpu.roll(yb, shift=amt, axis=1)
        if t != 4:                         # center-tap mask is all ones: skip
            yt = yt * mask_ref[pl.ds(t, 1), :]                     # zero padding
        stack_ref[pl.ds(t * c, c), :] = yt


# ---------------------------------------------------------------------------
# Fused Pallas kernels
# ---------------------------------------------------------------------------
def _in_layers_kernel(x_ref, g_ref, b_ref, avg_ref, w_ref, mask_ref, add_ref,
                      o_ref, stack_ref, *, eps, width, c_in, np_roll):
    # GN + SiLU + im2col once per sample (inner grid axis = channel tiles).
    @pl.when(pl.program_id(1) == 0)
    def _():
        _build_gn_silu_tap_stack(x_ref, g_ref, b_ref, avg_ref, mask_ref,
                                 stack_ref, eps=eps, width=width, c=c_in,
                                 np_roll=np_roll)
    acc = jnp.dot(w_ref[...], stack_ref[...],
                  preferred_element_type=jnp.float32)              # [tile, HW]
    # fused epilogue: conv bias + broadcast timestep embedding; h stored bf16
    o_ref[...] = (acc + add_ref[...]).astype(o_ref.dtype)


def _out_identity_kernel(h_ref, x_ref, g_ref, b_ref, avg_ref, w_ref, mask_ref,
                         add_ref, o_ref, stack_ref, *, eps, width, c_h,
                         np_roll):
    # nn.Dropout between SiLU and the conv is the identity in eval mode.
    @pl.when(pl.program_id(1) == 0)
    def _():
        _build_gn_silu_tap_stack(h_ref, g_ref, b_ref, avg_ref, mask_ref,
                                 stack_ref, eps=eps, width=width, c=c_h,
                                 np_roll=np_roll)
    acc = jnp.dot(w_ref[...], stack_ref[...],
                  preferred_element_type=jnp.float32)
    o_ref[...] = acc + x_ref[...] + add_ref[...]                   # identity skip


def _out_convskip_kernel(h_ref, x_ref, g_ref, b_ref, avg_ref, w_ref, wskip_ref,
                         mask_ref, add_ref, o_ref, stack_ref, *, eps, width,
                         c_h, np_roll):
    @pl.when(pl.program_id(1) == 0)
    def _():
        _build_gn_silu_tap_stack(h_ref, g_ref, b_ref, avg_ref, mask_ref,
                                 stack_ref, eps=eps, width=width, c=c_h,
                                 np_roll=np_roll)
    acc = jnp.dot(w_ref[...], stack_ref[...],
                  preferred_element_type=jnp.float32)
    skip = jnp.dot(wskip_ref[...], x_ref[...].astype(jnp.bfloat16),
                   preferred_element_type=jnp.float32)             # 1x1 skip conv
    o_ref[...] = acc + skip + add_ref[...]


# ---------------------------------------------------------------------------
# pallas_call wrappers
# ---------------------------------------------------------------------------
def _vmem_limit_bytes(*buffer_bytes):
    # 2x for double-buffering + generous margin; stay below v7x's 64 MiB
    # physical VMEM, above v5e's 16 MiB / v6e's 32 MiB scoped defaults.
    need = 2 * int(sum(buffer_bytes)) + (8 << 20)
    return int(min(max(need, 32 << 20), 60 << 20))


def _compiler_params(vmem_bytes):
    # sample axis parallel (megacore), channel-tile axis sequential so the
    # per-sample tap-stack scratch can be reused across tiles.
    return pltpu.CompilerParams(
        dimension_semantics=("parallel", "arbitrary"),
        vmem_limit_bytes=vmem_bytes)


def _in_layers_call(x_l, gamma, beta, avg, w2d, masks_bf, addend, *, H, W,
                    tile):
    n, c_in, hw = x_l.shape
    c_out, k9 = w2d.shape                       # k9 == 9 * c_in
    kern = functools.partial(_in_layers_kernel, eps=GN_EPS, width=W, c_in=c_in,
                             np_roll=_roll_semantics_is_numpy())
    vmem = _vmem_limit_bytes(c_in * hw * 4,     # x block
                             tile * k9 * 2,     # weight block
                             tile * hw * 2,     # bf16 output block
                             k9 * hw * 2,       # tap-stack scratch
                             masks_bf.size * 2 + avg.size * 4 + (1 << 16))
    cost = pl.CostEstimate(
        flops=int(2 * n * c_out * k9 * hw + 12 * n * c_in * hw),
        transcendentals=int(n * c_in * hw),
        bytes_accessed=int(x_l.size * 4 + w2d.size * 2 + n * c_out * hw * 2
                           + masks_bf.size * 2 + avg.size * 4
                           + addend.size * 4))
    return pl.pallas_call(
        kern,
        out_shape=jax.ShapeDtypeStruct((n, c_out, hw), jnp.bfloat16),
        grid=(n, c_out // tile),
        in_specs=[
            pl.BlockSpec((None, c_in, hw), lambda s, j: (s, 0, 0)),   # x (sample s)
            pl.BlockSpec((c_in, 1), lambda s, j: (0, 0)),             # gamma
            pl.BlockSpec((c_in, 1), lambda s, j: (0, 0)),             # beta
            pl.BlockSpec((c_in, c_in), lambda s, j: (0, 0)),          # group avg
            pl.BlockSpec((tile, k9), lambda s, j: (j, 0)),            # conv W [Co,9Ci]
            pl.BlockSpec((9, hw), lambda s, j: (0, 0)),               # pad masks
            pl.BlockSpec((None, tile, 1), lambda s, j: (s, j, 0)),    # bias + emb
        ],
        out_specs=pl.BlockSpec((None, tile, hw), lambda s, j: (s, j, 0)),
        scratch_shapes=[pltpu.VMEM((k9, hw), jnp.bfloat16)],
        compiler_params=_compiler_params(vmem),
        cost_estimate=cost,
    )(x_l, gamma, beta, avg, w2d, masks_bf, addend)


def _out_layers_call(h_l, x_l, gamma, beta, avg, w2d, wskip, masks_bf, addend,
                     *, H, W, tile):
    n, c_h, hw = h_l.shape
    c_skip = x_l.shape[1]
    c_out, k9 = w2d.shape                       # k9 == 9 * c_h
    np_roll = _roll_semantics_is_numpy()
    skip_flops = 0 if wskip is None else 2 * n * c_out * c_skip * hw
    cost = pl.CostEstimate(
        flops=int(2 * n * c_out * k9 * hw + 12 * n * c_h * hw + skip_flops),
        transcendentals=int(n * c_h * hw),
        bytes_accessed=int(h_l.size * 2 + x_l.size * 4 + w2d.size * 2
                           + n * c_out * hw * 4 + masks_bf.size * 2
                           + avg.size * 4 + addend.size * 4))
    vmem = _vmem_limit_bytes(c_h * hw * 2,                      # h block (bf16)
                             max(c_skip, tile) * hw * 4,        # x block
                             tile * k9 * 2,                     # weight block
                             tile * hw * 4,                     # f32 output block
                             k9 * hw * 2,                       # tap-stack scratch
                             (0 if wskip is None else tile * c_skip * 2)
                             + masks_bf.size * 2 + avg.size * 4 + (1 << 16))
    if wskip is None:
        kern = functools.partial(_out_identity_kernel, eps=GN_EPS, width=W,
                                 c_h=c_h, np_roll=np_roll)
        in_specs = [
            pl.BlockSpec((None, c_h, hw), lambda s, j: (s, 0, 0)),    # h
            pl.BlockSpec((None, tile, hw), lambda s, j: (s, j, 0)),   # x (identity)
            pl.BlockSpec((c_h, 1), lambda s, j: (0, 0)),
            pl.BlockSpec((c_h, 1), lambda s, j: (0, 0)),
            pl.BlockSpec((c_h, c_h), lambda s, j: (0, 0)),
            pl.BlockSpec((tile, k9), lambda s, j: (j, 0)),
            pl.BlockSpec((9, hw), lambda s, j: (0, 0)),
            pl.BlockSpec((None, tile, 1), lambda s, j: (s, j, 0)),
        ]
        args = (h_l, x_l, gamma, beta, avg, w2d, masks_bf, addend)
    else:
        kern = functools.partial(_out_convskip_kernel, eps=GN_EPS, width=W,
                                 c_h=c_h, np_roll=np_roll)
        in_specs = [
            pl.BlockSpec((None, c_h, hw), lambda s, j: (s, 0, 0)),    # h
            pl.BlockSpec((None, c_skip, hw), lambda s, j: (s, 0, 0)), # x (skip in)
            pl.BlockSpec((c_h, 1), lambda s, j: (0, 0)),
            pl.BlockSpec((c_h, 1), lambda s, j: (0, 0)),
            pl.BlockSpec((c_h, c_h), lambda s, j: (0, 0)),
            pl.BlockSpec((tile, k9), lambda s, j: (j, 0)),
            pl.BlockSpec((tile, c_skip), lambda s, j: (j, 0)),        # 1x1 skip W
            pl.BlockSpec((9, hw), lambda s, j: (0, 0)),
            pl.BlockSpec((None, tile, 1), lambda s, j: (s, j, 0)),
        ]
        args = (h_l, x_l, gamma, beta, avg, w2d, wskip, masks_bf, addend)
    return pl.pallas_call(
        kern,
        out_shape=jax.ShapeDtypeStruct((n, c_out, hw), jnp.float32),
        grid=(n, c_out // tile),
        in_specs=in_specs,
        out_specs=pl.BlockSpec((None, tile, hw), lambda s, j: (s, j, 0)),
        scratch_shapes=[pltpu.VMEM((k9, hw), jnp.bfloat16)],
        compiler_params=_compiler_params(vmem),
        cost_estimate=cost,
    )(*args)


# ---------------------------------------------------------------------------
# Glue helpers (tiny, parameter-sized)
# ---------------------------------------------------------------------------
def _tile_size(c_out):
    # largest out-channel tile <= 256 that divides c_out (amortizes per-step
    # overhead, fills the MXU M dimension).  TODO(synk): re-derive the cap per
    # generation once realistic (C, HW) sizes approach the VMEM limit.
    for cand in (256, 128, 64, 32):
        if c_out % cand == 0:
            return min(cand, c_out)
    return c_out


def _group_avg_matrix(channels, hw):
    cg = channels // NUM_GROUPS
    gid = jnp.arange(channels, dtype=jnp.int32) // cg
    same = (gid[:, None] == gid[None, :]).astype(jnp.float32)
    return same / float(cg * hw)


def _conv_pad_masks(H, W):
    hw = H * W
    hh = jnp.arange(hw, dtype=jnp.int32) // W
    ww = jnp.arange(hw, dtype=jnp.int32) % W
    rows = []
    for di in range(3):
        for dj in range(3):
            hv = (hh + di - 1 >= 0) & (hh + di - 1 < H)
            wv = (ww + dj - 1 >= 0) & (ww + dj - 1 < W)
            rows.append((hv & wv).astype(jnp.float32))
    return jnp.stack(rows, axis=0)                                # [9, HW]


def _conv_weight_2d(w):
    """[Cout, Cin, 3, 3] (PyTorch OIHW) -> [Cout, 9*Cin] bf16, tap-major cols
    matching the stacked-operand row order (row = t*Cin + cin)."""
    c_out, c_in = w.shape[0], w.shape[1]
    return jnp.transpose(w, (0, 2, 3, 1)).reshape(c_out, 9 * c_in).astype(
        jnp.bfloat16)


# ---------------------------------------------------------------------------
# ResBlock forward (mirrors ResBlock._forward, use_scale_shift_norm=False)
# ---------------------------------------------------------------------------
def resblock_forward(params, x, emb):
    N, C, H, W = x.shape
    c_out = params["conv1_w"].shape[0]
    hw = H * W
    assert C % NUM_GROUPS == 0 and c_out % NUM_GROUPS == 0
    # TODO(synk): pad the spatial axis for feature maps with H*W % 128 != 0.
    assert hw % 128 == 0, "spatial size must fill whole lanes"
    tile = _tile_size(c_out)

    # (N, C, H, W) -> (N, C, H*W) is a pure reshape: no HBM transpose passes.
    x_l = x.astype(jnp.float32).reshape(N, C, hw)

    # emb_layers: SiLU -> Linear  (batch rows only -> plain jnp, no kernel)
    e = emb.astype(jnp.float32)
    e = e * jax.nn.sigmoid(e)
    emb_out = jnp.dot(e, params["emb_w"].T,
                      precision=lax.Precision.HIGHEST) + params["emb_b"]

    masks_bf = _conv_pad_masks(H, W).astype(jnp.bfloat16)
    avg1 = _group_avg_matrix(C, hw)
    avg2 = _group_avg_matrix(c_out, hw)
    w1 = _conv_weight_2d(params["conv1_w"])        # [c_out, 9*C]     bf16
    w2 = _conv_weight_2d(params["conv2_w"])        # [c_out, 9*c_out] bf16

    # kernel 1: GN + SiLU + conv3x3 + (bias + emb); h handed off in bf16
    add1 = (emb_out + params["conv1_b"][None, :]).reshape(N, c_out, 1)
    h = _in_layers_call(x_l,
                        params["norm1_w"].reshape(C, 1),
                        params["norm1_b"].reshape(C, 1),
                        avg1, w1, masks_bf, add1, H=H, W=W, tile=tile)

    # kernel 2: GN + SiLU + (Dropout=id) + conv3x3 + (bias + skip)
    if params.get("skip_w") is not None:
        wskip = params["skip_w"].reshape(c_out, C).astype(jnp.bfloat16)
        bias2 = params["conv2_b"] + params["skip_b"]
    else:
        wskip = None
        bias2 = params["conv2_b"]
    add2 = jnp.broadcast_to(bias2.reshape(1, c_out, 1), (N, c_out, 1))
    y = _out_layers_call(h, x_l,
                         params["norm2_w"].reshape(c_out, 1),
                         params["norm2_b"].reshape(c_out, 1),
                         avg2, w2, wskip, masks_bf, add2, H=H, W=W, tile=tile)

    return y.reshape(N, c_out, H, W)               # free reshape back to NCHW


# ---------------------------------------------------------------------------
# Pure-JAX f32 reference (PyTorch ResBlock semantics) for the self-check
# ---------------------------------------------------------------------------
def resblock_reference(params, x, emb):
    def group_norm(v, gamma, beta):
        n, c, h, w = v.shape
        vg = v.reshape(n, NUM_GROUPS, (c // NUM_GROUPS) * h * w)
        mean = jnp.mean(vg, axis=-1, keepdims=True)
        var = jnp.var(vg, axis=-1, keepdims=True)        # biased, like PyTorch GN
        vn = ((vg - mean) / jnp.sqrt(var + GN_EPS)).reshape(n, c, h, w)
        return vn * gamma[None, :, None, None] + beta[None, :, None, None]

    def silu(v):
        return v * jax.nn.sigmoid(v)

    def conv(v, w, b, pad):
        out = lax.conv_general_dilated(
            v, w, (1, 1), ((pad, pad), (pad, pad)),
            dimension_numbers=("NCHW", "OIHW", "NCHW"),
            precision=lax.Precision.HIGHEST)
        return out + b[None, :, None, None]

    h = conv(silu(group_norm(x, params["norm1_w"], params["norm1_b"])),
             params["conv1_w"], params["conv1_b"], 1)
    e = jnp.dot(silu(emb), params["emb_w"].T,
                precision=lax.Precision.HIGHEST) + params["emb_b"]
    h = h + e[:, :, None, None]
    h2 = silu(group_norm(h, params["norm2_w"], params["norm2_b"]))
    h2 = conv(h2, params["conv2_w"], params["conv2_b"], 1)   # Dropout = identity
    if params.get("skip_w") is not None:
        skip = conv(x, params["skip_w"], params["skip_b"], 0)
    else:
        skip = x
    return skip + h2


# ---------------------------------------------------------------------------
# Deterministic parameter init
# ---------------------------------------------------------------------------
def init_resblock_params(key, channels, out_channels, emb_channels):
    ks = jax.random.split(key, 12)

    def unif(k, shape, fan_in):
        bound = 1.0 / math.sqrt(fan_in)
        return jax.random.uniform(k, shape, jnp.float32, -bound, bound)

    p = {
        # GroupNorm affine defaults are ones/zeros; slightly perturbed so the
        # gamma/beta path is really exercised (forward semantics unchanged).
        "norm1_w": 1.0 + 0.1 * jax.random.normal(ks[0], (channels,), jnp.float32),
        "norm1_b": 0.1 * jax.random.normal(ks[1], (channels,), jnp.float32),
        "conv1_w": unif(ks[2], (out_channels, channels, 3, 3), channels * 9),
        "conv1_b": unif(ks[3], (out_channels,), channels * 9),
        "emb_w": unif(ks[4], (out_channels, emb_channels), emb_channels),
        "emb_b": unif(ks[5], (out_channels,), emb_channels),
        "norm2_w": 1.0 + 0.1 * jax.random.normal(ks[6], (out_channels,), jnp.float32),
        "norm2_b": 0.1 * jax.random.normal(ks[7], (out_channels,), jnp.float32),
        # zero_module(conv2) in the original; small random values here (see NOTE).
        "conv2_w": unif(ks[8], (out_channels, out_channels, 3, 3), out_channels * 9),
        "conv2_b": unif(ks[9], (out_channels,), out_channels * 9),
        "skip_w": None,
        "skip_b": None,
    }
    if out_channels != channels:
        p["skip_w"] = unif(ks[10], (out_channels, channels, 1, 1), channels)
        p["skip_b"] = unif(ks[11], (out_channels,), channels)
    return p


# ---------------------------------------------------------------------------
# Main
# ---------------------------------------------------------------------------
if __name__ == "__main__":
    _roll_semantics_is_numpy()        # resolve roll direction before tracing

    root = jax.random.PRNGKey(0)
    kx, ke, kp1, kp2 = jax.random.split(root, 4)
    N, C, H, W = 2, 32, 16, 16
    EMB_CH = 128
    x = jax.random.normal(kx, (N, C, H, W), jnp.float32)
    emb = jax.random.normal(ke, (N, EMB_CH), jnp.float32)

    configs = [
        (64, kp1),   # out_channels != channels -> fused 1x1-conv skip
        (32, kp2),   # out_channels == channels -> identity skip
    ]
    for out_ch, kp in configs:
        params = init_resblock_params(kp, C, out_ch, EMB_CH)
        fwd = jax.jit(functools.partial(resblock_forward, params))
        out = jax.block_until_ready(fwd(x, emb))
        assert out.shape == (N, out_ch, H, W)
        assert bool(jnp.all(jnp.isfinite(out)))
        ref = resblock_reference(params, x, emb)
        max_err = float(jnp.max(jnp.abs(out - ref)))
        assert max_err < 1e-1, f"out_channels={out_ch}: max abs err {max_err}"

    print("KERNEL_OK")
</pallas_src>

<mosaic_0001>
module attributes {stable_mosaic.version = 11 : i64} {
  func.func @k(%arg0: memref<8x128xf32, #tpu.memory_space<vmem>>, %arg1: memref<8x128xf32, #tpu.memory_space<vmem>>) attributes {dimension_semantics = [], scalar_prefetch = 0 : i64, scratch_operands = 0 : i64, tpu.core_type = #tpu.core_type<tc>} {
    %c0 = arith.constant 0 : index
    %c0_0 = arith.constant 0 : index
    %0 = vector.load %arg0[%c0, %c0_0] : memref<8x128xf32, #tpu.memory_space<vmem>>, vector<8x128xf32>
    %c1_i32 = arith.constant 1 : i32
    %1 = tpu.dynamic_rotate %0 by %c1_i32 dim 1 : vector<8x128xf32>, i32 -> vector<8x128xf32>
    %c0_1 = arith.constant 0 : index
    %c0_2 = arith.constant 0 : index
    %2 = vector.load %arg1[%c0_1, %c0_2] : memref<8x128xf32, #tpu.memory_space<vmem>>, vector<8x128xf32>
    tpu.vector_store %arg1[%c0_1, %c0_2], %1 {strides = array<i32>} : memref<8x128xf32, #tpu.memory_space<vmem>>, vector<8x128xf32>,
    return
  }
}

</mosaic_0001>

<llo_original>
// kernel: tpu_custom_call.1
$region0: #{tpu_custom_call.1}
  #allocation0 [shape = 'u32[]', space=smem, size = 0x4, offset = 0x4, fixed_abs, tag = 'smem constant byte address 0x4 - core index']
  #allocation1 [shape = 'u32[144,128]{1,0:T(1,128)}', space=vmem, size = 0x12000, scoped, tag = 'internal scratch']
  %s0 = inlined_call_operand.hbm [shape: f32[8,128], index: 0, kind: input, shape index: {}]
  %s1 = inlined_call_operand.hbm [shape: f32[8,128], index: 1, kind: output, shape index: {}]
  %s2 = sld [smem:[#allocation0]]
  $region18: #{tpu_custom_call.1} parent=0
    _
  %s4 = ssub.s32 1, %s2
  %s5 = scalar_select 0, %s4, %s2
  $region1: #{tpu_custom_call.1} parent=0
    #allocation2 [shape = 'u8[4096]{0}', space=vmem, size = 0x1000, scoped, tag = 'input window, operand 0, single buffered']
    #allocation3 [shape = 's32[1]{0}', space=sflag, size = 0x4, scoped, tag = 'scoped memory for tpu_custom_call.1']
    #allocation4 [shape = 's32[1]{0}', space=sflag, size = 0x4, scoped, tag = 'scoped memory for tpu_custom_call.1']
    #allocation5 [shape = 'u8[4096]{0}', space=vmem, size = 0x1000, scoped, tag = 'output window, operand 0, single buffered']
    %6 = vsyncpa [#allocation3], 0
    %7 = vsyncpa [#allocation4], 0
    // Predicated region
    $region2: #{tpu_custom_call.1} parent=1 // pred_check
      _
    $region3: #{tpu_custom_call.1} parent=1 // pred_check_branch
      %9 = sbr.rel (0) target = $region5
    $region4: #{tpu_custom_call.1} parent=1 // pred_region
      %s11 = ssub.s32 128, 128
      %12 = vsyncadd [#allocation3], %s11
      %s14 = sshll.u32 [#allocation2], 4
      %s15 = int_to_ptr.vmem [resolvable:$true] %s14
      %17 = dma.hbm_to_vmem [thread:$0]  %s0, 128, %s15, [#allocation3]
    $region5: #{tpu_custom_call.1} parent=1 // pred_fallthru
      _
    // Predicated region
    $region6: #{tpu_custom_call.1} parent=1 // pred_check
      _
    $region7: #{tpu_custom_call.1} parent=1 // pred_check_branch
      %19 = sbr.rel (0) target = $region9
    $region8: #{tpu_custom_call.1} parent=1 // pred_region
      %20 = dma.done [#allocation3], 128
    $region9: #{tpu_custom_call.1} parent=1 // pred_fallthru
      _
    %v21 = vld [vmem:[#allocation2] sm:$0xff]
    %22 = vrot.lane.b32.xlu0 %v21, 1
    %v23 = vpop.permute.xlu0 %22
    %24 = vst [vmem:[#allocation5] sm:$0xff] %v23
    // Predicated region
    $region10: #{tpu_custom_call.1} parent=1 // pred_check
      _
    $region11: #{tpu_custom_call.1} parent=1 // pred_check_branch
      %26 = sbr.rel (0) target = $region13
    $region12: #{tpu_custom_call.1} parent=1 // pred_region
      %s28 = ssub.s32 128, 128
      %29 = vsyncadd [#allocation4], %s28
      %s31 = sshll.u32 [#allocation5], 4
      %s32 = int_to_ptr.vmem [resolvable:$true] %s31
      %34 = dma.vmem_to_hbm [thread:$0]  %s32, 128, %s1, [#allocation4]
    $region13: #{tpu_custom_call.1} parent=1 // pred_fallthru
      _
    // Predicated region
    $region14: #{tpu_custom_call.1} parent=1 // pred_check
      _
    $region15: #{tpu_custom_call.1} parent=1 // pred_check_branch
      %36 = sbr.rel (0) target = $region17
    $region16: #{tpu_custom_call.1} parent=1 // pred_region
      %37 = dma.done [#allocation4], 128
    $region17: #{tpu_custom_call.1} parent=1 // pred_fallthru
      _
    %38 = vsyncpa [#allocation3], 1
    %39 = vsyncpa [#allocation4], 1

</llo_original>
